<compile_context>
chip_gen: v6e
topology: v6e:2x2x1
jax: 0.10.0
libtpu: 0.0.40
codegen_flags: <defaults>
</compile_context>

<pallas_src>
import functools

import jax
import jax.numpy as jnp
from jax import lax
from jax.experimental import pallas as pl
from jax.experimental.pallas import tpu as pltpu

FEAT_DIM = 128


def _fused_kernel(x_ref, wft_ref, bf_ref, wcat_ref, bcat_ref,
                  out_ref, acc_ref, *, bt, c_in, inv_hw):
    """Grid = (B_pad // bt, HW_pad // hw_tile); the last axis is the HW reduction."""
    k = pl.program_id(1)
    nk = pl.num_programs(1)

    @pl.when(k == 0)
    def _init():
        acc_ref[...] = jnp.zeros_like(acc_ref)

    wft = wft_ref[...]                      # (C_feat, C_in)
    bf = bf_ref[...]                        # (C_feat, 1) -> broadcasts over lanes

    hw_tile = x_ref.shape[1]
    # Cap the live feature tile at C_feat x 1024 (~32 vregs at C_feat=32).
    chunk = 1024 if hw_tile % 1024 == 0 else hw_tile
    n_chunks = hw_tile // chunk
    ones_row = jnp.ones((1, chunk), jnp.float32)

    # forward_features on this spatial block: pointwise conv + ReLU, then a
    # partial spatial sum per batch row.  The reduction is done on the MXU
    # (ones_row @ feat.T) so the XLU stays free; accumulation is a direct
    # row-update of the VMEM accumulator (no concatenate).
    for b in range(bt):
        base = b * c_in
        row = None
        for c in range(n_chunks):
            xb = x_ref[pl.ds(base, c_in), pl.ds(c * chunk, chunk)]   # (C_in, chunk)
            feat = jnp.dot(wft, xb, preferred_element_type=jnp.float32)
            feat = jnp.maximum(feat + bf, 0.0)                       # (C_feat, chunk)
            part = lax.dot_general(
                ones_row, feat,
                dimension_numbers=(((1,), (1,)), ((), ())),
                preferred_element_type=jnp.float32)                  # (1, C_feat)
            row = part if row is None else row + part
        acc_ref[pl.ds(b, 1), :] += row

    @pl.when(k == nk - 1)
    def _finalize():
        pooled = acc_ref[...] * inv_hw                 # (bt, C_feat) global-avg-pool
        # All three heads as one fused lane-dense GEMM (HW-padding correction is
        # already folded into bcat by the wrapper).
        head = jnp.dot(pooled, wcat_ref[...],
                       preferred_element_type=jnp.float32) + bcat_ref[...]
        # train_head output occupies lanes [0, FEAT_DIM); L2-normalize it
        # (matches F.normalize: x / max(||x||, 1e-12)).
        fc = head[:, :FEAT_DIM]
        inv_norm = lax.rsqrt(
            jnp.maximum(jnp.sum(fc * fc, axis=1, keepdims=True), 1e-24))
        out_ref[:, :FEAT_DIM] = fc * inv_norm
        out_ref[:, FEAT_DIM:] = head[:, FEAT_DIM:]


def _plan_batch(batch):
    """Return (b_pad, bt).  b_pad keeps the batch a multiple of 8 (padded when
    worthwhile); bt prefers >=2 batch grid steps so v7x megacore gets work."""
    if batch % 8 != 0 and batch > 8:
        b_pad = ((batch + 7) // 8) * 8
    else:
        b_pad = batch
    if b_pad % 8 != 0:                      # tiny batch: one full-extent block
        return b_pad, b_pad
    for cand in (32, 16, 8):
        if b_pad % cand == 0 and b_pad // cand >= 2:
            return b_pad, cand
    return b_pad, min(b_pad, 32)


def _plan_hw(hw, bt, c_in, c_feat):
    """Return (hw_tile, hw_pad): a lane-dense spatial tile (multiple of 128, up
    to 8192) and HW padded to a multiple of it.  Prefers the largest tile that
    fits a ~24 MiB x/feat working-set budget, gives >=2 k-steps for pipeline
    overlap, and wastes <=12.5% on zero padding."""
    per_lane = 4 * (2 * bt * c_in + c_feat)
    cap = max(128, min(8192, ((24 << 20) // per_lane) // 128 * 128))
    for t in (8192, 4096, 2048, 1024, 512, 256, 128):
        if t > cap:
            continue
        hw_pad = -(-hw // t) * t
        if hw_pad // t >= 2 and (hw_pad - hw) * 8 <= hw:
            return t, hw_pad
    hw_pad = -(-hw // 128) * 128
    return hw_pad, hw_pad                   # single spatial step (small HW)


def _vmem_budget(bt, c_in, c_feat, hw_tile, n_pad, w_elems):
    x_blk = bt * c_in * hw_tile * 4
    out_blk = bt * n_pad * 4
    feat_work = c_feat * min(hw_tile, 1024) * 4
    budget = 2 * x_blk + 2 * out_blk + 2 * w_elems * 4 + 4 * feat_work + (4 << 20)
    return int(min(max(budget, 16 << 20), 48 << 20))   # 48 MiB fits v7x's 64 MiB


def custom_model_forward(x_nchw, params):
    """forward(x, train=True, use_ph=True) ->
       (out_linear, out_linear_debias, F.normalize(feat_c, dim=1))"""
    B, C_in, H, W = x_nchw.shape
    HW = H * W

    wf = params["w_feat"]                       # (C_in, C_feat)
    bf = params["b_feat"]                       # (1, C_feat)
    C_feat = wf.shape[1]
    num_class = params["w_head"].shape[1]

    b_pad, bt = _plan_batch(B)
    hw_tile, hw_pad = _plan_hw(HW, bt, C_in, C_feat)

    # NCHW -> (B*C_in, HW): pure reshape (no transpose).  HW stays lane-dense
    # and the (bt*C_in, hw_tile) block packs sublanes fully.
    x = x_nchw.reshape(B * C_in, HW)
    if hw_pad != HW:
        x = jnp.pad(x, ((0, 0), (0, hw_pad - HW)))
    if b_pad != B:
        x = jnp.pad(x, ((0, (b_pad - B) * C_in), (0, 0)))

    # Tiny one-time weight prep outside the kernel.
    wft = wf.T                                  # (C_feat, C_in)
    bf_col = bf.reshape(C_feat, 1)

    # Fuse the three heads into one lane-dense GEMM:
    #   cols [0, FEAT_DIM)                     -> train_head
    #   cols [FEAT_DIM, FEAT_DIM + nc)         -> model.head
    #   cols [FEAT_DIM + nc, FEAT_DIM + 2*nc)  -> ph_head
    #   remaining cols                          -> zero padding (to 128-multiple)
    n_raw = FEAT_DIM + 2 * num_class
    n_pad = ((n_raw + 127) // 128) * 128
    w_cat = jnp.concatenate(
        [params["w_train"], params["w_head"], params["w_ph"]], axis=1)
    b_cat = jnp.concatenate(
        [params["b_train"], params["b_head"], params["b_ph"]], axis=1)
    if n_pad != n_raw:
        w_cat = jnp.pad(w_cat, ((0, 0), (0, n_pad - n_raw)))
        b_cat = jnp.pad(b_cat, ((0, 0), (0, n_pad - n_raw)))

    # Spatial zero-padding contributes ReLU(b_feat) per padded column to every
    # batch row's spatial sum; fold the exact (linear) correction into the
    # fused head bias so the kernel needs no extra logic.
    pad_cols = hw_pad - HW
    if pad_cols:
        corr = (pad_cols / HW) * jnp.maximum(bf, 0.0)    # (1, C_feat)
        b_cat = b_cat - corr @ w_cat

    grid = (b_pad // bt, hw_pad // hw_tile)
    full2d = lambda arr: pl.BlockSpec(arr.shape, lambda b, k: (0, 0))

    grid_spec = pltpu.PrefetchScalarGridSpec(
        num_scalar_prefetch=0,
        grid=grid,
        in_specs=[
            pl.BlockSpec((bt * C_in, hw_tile), lambda b, k: (b, k)),
            full2d(wft),
            full2d(bf_col),
            full2d(w_cat),
            full2d(b_cat),
        ],
        out_specs=pl.BlockSpec((bt, n_pad), lambda b, k: (b, 0)),
        scratch_shapes=[pltpu.VMEM((bt, C_feat), jnp.float32)],
    )

    kernel = functools.partial(_fused_kernel, bt=bt, c_in=C_in, inv_hw=1.0 / HW)
    vmem_limit = _vmem_budget(
        bt, C_in, C_feat, hw_tile, n_pad,
        wft.size + bf_col.size + w_cat.size + b_cat.size)

    slab = pl.pallas_call(
        kernel,
        out_shape=jax.ShapeDtypeStruct((b_pad, n_pad), jnp.float32),
        grid_spec=grid_spec,
        compiler_params=pltpu.CompilerParams(
            dimension_semantics=("parallel", "arbitrary"),
            vmem_limit_bytes=vmem_limit),
    )(x, wft, bf_col, w_cat, b_cat)

    out_linear = slab[:B, FEAT_DIM:FEAT_DIM + num_class]
    out_linear_debias = slab[:B, FEAT_DIM + num_class:FEAT_DIM + 2 * num_class]
    feat_c = slab[:B, :FEAT_DIM]                # already L2-normalized in-kernel
    return out_linear, out_linear_debias, feat_c


def _xavier_uniform(key, fan_in, fan_out):
    limit = jnp.sqrt(6.0 / (fan_in + fan_out))
    return jax.random.uniform(key, (fan_in, fan_out), jnp.float32, -limit, limit)


def make_params(key, c_in, c_feat, num_class):
    k = jax.random.split(key, 4)
    w_feat = _xavier_uniform(k[0], c_in, c_feat)
    b_feat = jnp.zeros((1, c_feat), jnp.float32)
    # model.head.fc after reset_classifier_and_stop_grad / init_weights:
    #   xavier_uniform weight, bias filled with 0.01
    w_head = _xavier_uniform(k[1], c_feat, num_class)
    b_head = jnp.full((1, num_class), 0.01, jnp.float32)
    # ph_head = deepcopy(model.head) -> identical weights
    w_ph = jnp.array(w_head)
    b_ph = jnp.array(b_head)
    # train_head.fc = nn.Linear(c_feat, FEAT_DIM)
    w_train = _xavier_uniform(k[2], c_feat, FEAT_DIM)
    b_train = jnp.zeros((1, FEAT_DIM), jnp.float32)
    return dict(w_feat=w_feat, b_feat=b_feat,
                w_head=w_head, b_head=b_head,
                w_ph=w_ph, b_ph=b_ph,
                w_train=w_train, b_train=b_train)


def _reference(x_nchw, p):
    B, C_in, H, W = x_nchw.shape
    x = jnp.transpose(x_nchw, (0, 2, 3, 1)).reshape(B, H * W, C_in)
    feat = jnp.maximum(x @ p["w_feat"] + p["b_feat"], 0.0)
    pooled = feat.mean(axis=1)
    out_lin = pooled @ p["w_head"] + p["b_head"]
    out_deb = pooled @ p["w_ph"] + p["b_ph"]
    fc = pooled @ p["w_train"] + p["b_train"]
    fc = fc / jnp.maximum(jnp.linalg.norm(fc, axis=1, keepdims=True), 1e-12)
    return out_lin, out_deb, fc


if __name__ == "__main__":
    key = jax.random.PRNGKey(0)
    kx, kp = jax.random.split(key)

    B, C_in, H, W = 2, 4, 16, 16
    C_feat, num_class = 32, 10

    x = jax.random.normal(kx, (B, C_in, H, W), jnp.float32)
    params = make_params(kp, C_in, C_feat, num_class)

    out_lin, out_deb, feat_c = custom_model_forward(x, params)
    jax.block_until_ready((out_lin, out_deb, feat_c))

    ref_lin, ref_deb, ref_fc = _reference(x, params)
    assert out_lin.shape == (B, num_class)
    assert out_deb.shape == (B, num_class)
    assert feat_c.shape == (B, FEAT_DIM)
    assert jnp.allclose(out_lin, ref_lin, atol=1e-4, rtol=1e-4)
    assert jnp.allclose(out_deb, ref_deb, atol=1e-4, rtol=1e-4)
    assert jnp.allclose(feat_c, ref_fc, atol=1e-4, rtol=1e-4)

    print("KERNEL_OK")
</pallas_src>

<mosaic_0001>
module attributes {stable_mosaic.version = 11 : i64} {
  func.func @_fused_kernel(%arg0: i32, %arg1: i32, %arg2: memref<8x128xf32, #tpu.memory_space<vmem>>, %arg3: memref<32x4xf32, #tpu.memory_space<vmem>>, %arg4: memref<32x1xf32, #tpu.memory_space<vmem>>, %arg5: memref<32x256xf32, #tpu.memory_space<vmem>>, %arg6: memref<1x256xf32, #tpu.memory_space<vmem>>, %arg7: memref<2x256xf32, #tpu.memory_space<vmem>>, %arg8: memref<2x32xf32, #tpu.memory_space<vmem>>) attributes {dimension_semantics = [#tpu.dimension_semantics<parallel>, #tpu.dimension_semantics<arbitrary>], iteration_bounds = array<i64: 1, 2>, scalar_prefetch = 0 : i64, scratch_operands = 1 : i64, tpu.core_type = #tpu.core_type<tc>, window_params = [{transform_indices = @transform_0, window_bounds = array<i64: 8, 128>}, {pipeline_mode = #tpu.pipeline_mode<synchronous>, transform_indices = @transform_1, window_bounds = array<i64: 32, 4>}, {pipeline_mode = #tpu.pipeline_mode<synchronous>, transform_indices = @transform_2, window_bounds = array<i64: 32, 1>}, {pipeline_mode = #tpu.pipeline_mode<synchronous>, transform_indices = @transform_3, window_bounds = array<i64: 32, 256>}, {pipeline_mode = #tpu.pipeline_mode<synchronous>, transform_indices = @transform_4, window_bounds = array<i64: 1, 256>}, {transform_indices = @transform_5, window_bounds = array<i64: 2, 256>}]} {
    %c0_i32 = arith.constant 0 : i32
    %0 = arith.cmpi eq, %arg1, %c0_i32 : i32
    %1 = arith.extui %0 : i1 to i32
    %c0_i32_0 = arith.constant 0 : i32
    %2 = arith.cmpi ne, %1, %c0_i32_0 : i32
    scf.if %2 {
      %cst_21 = arith.constant 0.000000e+00 : f32
      %29 = vector.broadcast %cst_21 : f32 to vector<2x32xf32>
      %c0_22 = arith.constant 0 : index
      %c0_23 = arith.constant 0 : index
      %30 = vector.load %arg8[%c0_22, %c0_23] : memref<2x32xf32, #tpu.memory_space<vmem>>, vector<2x32xf32>
      tpu.vector_store %arg8[%c0_22, %c0_23], %29 {strides = array<i32>} : memref<2x32xf32, #tpu.memory_space<vmem>>, vector<2x32xf32>,
    } else {
    }
    %c0 = arith.constant 0 : index
    %c0_1 = arith.constant 0 : index
    %3 = vector.load %arg3[%c0, %c0_1] : memref<32x4xf32, #tpu.memory_space<vmem>>, vector<32x4xf32>
    %c0_2 = arith.constant 0 : index
    %c0_3 = arith.constant 0 : index
    %4 = vector.load %arg4[%c0_2, %c0_3] : memref<32x1xf32, #tpu.memory_space<vmem>>, vector<32x1xf32>
    %cst = arith.constant 1.000000e+00 : f32
    %5 = vector.broadcast %cst : f32 to vector<1x128xf32>
    %c0_4 = arith.constant 0 : index
    %c0_5 = arith.constant 0 : index
    %6 = vector.load %arg2[%c0_4, %c0_5] : memref<8x128xf32, #tpu.memory_space<vmem>>, vector<4x128xf32>
    %cst_6 = arith.constant dense<0.000000e+00> : vector<32x128xf32>
    %7 = tpu.matmul %3, %6, %cst_6 {dimension_numbers = #tpu.dot_dimension_numbers<[1], [0], [0], [1], [0, 0, 1, 1], [], []>} : vector<32x4xf32>, vector<4x128xf32>, vector<32x128xf32> -> vector<32x128xf32>
    %8 = vector.broadcast %4 : vector<32x1xf32> to vector<32x128xf32>
    %9 = arith.addf %7, %8 : vector<32x128xf32>
    %cst_7 = arith.constant 0.000000e+00 : f32
    %10 = vector.broadcast %cst_7 : f32 to vector<32x128xf32>
    %11 = arith.maximumf %9, %10 : vector<32x128xf32>
    %cst_8 = arith.constant dense<0.000000e+00> : vector<1x32xf32>
    %12 = tpu.matmul %5, %11, %cst_8 {dimension_numbers = #tpu.dot_dimension_numbers<[1], [1], [0], [0], [0, 0, 1, 0], [], []>} : vector<1x128xf32>, vector<32x128xf32>, vector<1x32xf32> -> vector<1x32xf32>
    %c0_9 = arith.constant 0 : index
    %c0_10 = arith.constant 0 : index
    %13 = vector.load %arg8[%c0_9, %c0_10] : memref<2x32xf32, #tpu.memory_space<vmem>>, vector<1x32xf32>
    %14 = arith.addf %13, %12 : vector<1x32xf32>
    %c0_11 = arith.constant 0 : index
    %c0_12 = arith.constant 0 : index
    %15 = vector.load %arg8[%c0_11, %c0_12] : memref<2x32xf32, #tpu.memory_space<vmem>>, vector<1x32xf32>
    tpu.vector_store %arg8[%c0_11, %c0_12], %14 {strides = array<i32>} : memref<2x32xf32, #tpu.memory_space<vmem>>, vector<1x32xf32>,
    %c4 = arith.constant 4 : index
    %c0_13 = arith.constant 0 : index
    %16 = vector.load %arg2[%c4, %c0_13] : memref<8x128xf32, #tpu.memory_space<vmem>>, vector<4x128xf32>
    %cst_14 = arith.constant dense<0.000000e+00> : vector<32x128xf32>
    %17 = tpu.matmul %3, %16, %cst_14 {dimension_numbers = #tpu.dot_dimension_numbers<[1], [0], [0], [1], [0, 0, 1, 1], [], []>} : vector<32x4xf32>, vector<4x128xf32>, vector<32x128xf32> -> vector<32x128xf32>
    %18 = vector.broadcast %4 : vector<32x1xf32> to vector<32x128xf32>
    %19 = arith.addf %17, %18 : vector<32x128xf32>
    %cst_15 = arith.constant 0.000000e+00 : f32
    %20 = vector.broadcast %cst_15 : f32 to vector<32x128xf32>
    %21 = arith.maximumf %19, %20 : vector<32x128xf32>
    %cst_16 = arith.constant dense<0.000000e+00> : vector<1x32xf32>
    %22 = tpu.matmul %5, %21, %cst_16 {dimension_numbers = #tpu.dot_dimension_numbers<[1], [1], [0], [0], [0, 0, 1, 0], [], []>} : vector<1x128xf32>, vector<32x128xf32>, vector<1x32xf32> -> vector<1x32xf32>
    %c1 = arith.constant 1 : index
    %c0_17 = arith.constant 0 : index
    %23 = vector.load %arg8[%c1, %c0_17] : memref<2x32xf32, #tpu.memory_space<vmem>>, vector<1x32xf32>
    %24 = arith.addf %23, %22 : vector<1x32xf32>
    %c1_18 = arith.constant 1 : index
    %c0_19 = arith.constant 0 : index
    %25 = vector.load %arg8[%c1_18, %c0_19] : memref<2x32xf32, #tpu.memory_space<vmem>>, vector<1x32xf32>
    tpu.vector_store %arg8[%c1_18, %c0_19], %24 {strides = array<i32>} : memref<2x32xf32, #tpu.memory_space<vmem>>, vector<1x32xf32>,
    %c1_i32 = arith.constant 1 : i32
    %26 = arith.cmpi eq, %arg1, %c1_i32 : i32
    %27 = arith.extui %26 : i1 to i32
    %c0_i32_20 = arith.constant 0 : i32
    %28 = arith.cmpi ne, %27, %c0_i32_20 : i32
    scf.if %28 {
      %c0_21 = arith.constant 0 : index
      %c0_22 = arith.constant 0 : index
      %29 = vector.load %arg8[%c0_21, %c0_22] : memref<2x32xf32, #tpu.memory_space<vmem>>, vector<2x32xf32>
      %cst_23 = arith.constant 3.906250e-03 : f32
      %30 = vector.broadcast %cst_23 : f32 to vector<2x32xf32>
      %31 = arith.mulf %29, %30 : vector<2x32xf32>
      %c0_24 = arith.constant 0 : index
      %c0_25 = arith.constant 0 : index
      %32 = vector.load %arg5[%c0_24, %c0_25] : memref<32x256xf32, #tpu.memory_space<vmem>>, vector<32x256xf32>
      %cst_26 = arith.constant dense<0.000000e+00> : vector<2x256xf32>
      %33 = tpu.matmul %31, %32, %cst_26 {dimension_numbers = #tpu.dot_dimension_numbers<[1], [0], [0], [1], [0, 0, 1, 1], [], []>} : vector<2x32xf32>, vector<32x256xf32>, vector<2x256xf32> -> vector<2x256xf32>
      %c0_27 = arith.constant 0 : index
      %c0_28 = arith.constant 0 : index
      %34 = vector.load %arg6[%c0_27, %c0_28] : memref<1x256xf32, #tpu.memory_space<vmem>>, vector<1x256xf32>
      %35 = vector.broadcast %34 : vector<1x256xf32> to vector<2x256xf32>
      %36 = arith.addf %33, %35 : vector<2x256xf32>
      %37 = vector.extract_strided_slice %36 {offsets = [0, 0], sizes = [2, 128], strides = [1, 1]} : vector<2x256xf32> to vector<2x128xf32>
      %38 = arith.mulf %37, %37 : vector<2x128xf32>
      %cst_29 = arith.constant dense<0.000000e+00> : vector<2xf32>
      %39 = vector.multi_reduction <add>, %38, %cst_29 [1] : vector<2x128xf32> to vector<2xf32>
      %40 = vector.shape_cast %39 : vector<2xf32> to vector<2x1xf32>
      %cst_30 = arith.constant 1.000000e-24 : f32
      %41 = vector.broadcast %cst_30 : f32 to vector<2x1xf32>
      %42 = arith.maximumf %40, %41 : vector<2x1xf32>
      %43 = math.rsqrt %42 : vector<2x1xf32>
      %44 = vector.broadcast %43 : vector<2x1xf32> to vector<2x128xf32>
      %45 = arith.mulf %37, %44 : vector<2x128xf32>
      %c0_31 = arith.constant 0 : index
      %c0_32 = arith.constant 0 : index
      %46 = vector.load %arg7[%c0_31, %c0_32] : memref<2x256xf32, #tpu.memory_space<vmem>>, vector<2x128xf32>
      tpu.vector_store %arg7[%c0_31, %c0_32], %45 {strides = array<i32>} : memref<2x256xf32, #tpu.memory_space<vmem>>, vector<2x128xf32>,
      %47 = vector.extract_strided_slice %36 {offsets = [0, 128], sizes = [2, 128], strides = [1, 1]} : vector<2x256xf32> to vector<2x128xf32>
      %c0_33 = arith.constant 0 : index
      %c128 = arith.constant 128 : index
      %48 = vector.load %arg7[%c0_33, %c128] : memref<2x256xf32, #tpu.memory_space<vmem>>, vector<2x128xf32>
      tpu.vector_store %arg7[%c0_33, %c128], %47 {strides = array<i32>} : memref<2x256xf32, #tpu.memory_space<vmem>>, vector<2x128xf32>,
    } else {
    }
    return
  }
  func.func @transform_0(%arg0: i32, %arg1: i32) -> (i32, i32) {
    %c0_i32 = arith.constant 0 : i32
    return %arg0, %arg1 : i32, i32
  }
  func.func @transform_1(%arg0: i32, %arg1: i32) -> (i32, i32) {
    %c0_i32 = arith.constant 0 : i32
    %c0_i32_0 = arith.constant 0 : i32
    %c0_i32_1 = arith.constant 0 : i32
    return %c0_i32, %c0_i32_0 : i32, i32
  }
  func.func @transform_2(%arg0: i32, %arg1: i32) -> (i32, i32) {
    %c0_i32 = arith.constant 0 : i32
    %c0_i32_0 = arith.constant 0 : i32
    %c0_i32_1 = arith.constant 0 : i32
    return %c0_i32, %c0_i32_0 : i32, i32
  }
  func.func @transform_3(%arg0: i32, %arg1: i32) -> (i32, i32) {
    %c0_i32 = arith.constant 0 : i32
    %c0_i32_0 = arith.constant 0 : i32
    %c0_i32_1 = arith.constant 0 : i32
    return %c0_i32, %c0_i32_0 : i32, i32
  }
  func.func @transform_4(%arg0: i32, %arg1: i32) -> (i32, i32) {
    %c0_i32 = arith.constant 0 : i32
    %c0_i32_0 = arith.constant 0 : i32
    %c0_i32_1 = arith.constant 0 : i32
    return %c0_i32, %c0_i32_0 : i32, i32
  }
  func.func @transform_5(%arg0: i32, %arg1: i32) -> (i32, i32) {
    %c0_i32 = arith.constant 0 : i32
    %c0_i32_0 = arith.constant 0 : i32
    return %arg0, %c0_i32 : i32, i32
  }
}

</mosaic_0001>

<llo_original>
// kernel: tpu_custom_call.1
$region0: #{tpu_custom_call.1}
  #allocation0 [shape = 'u32[]', space=smem, size = 0x4, offset = 0x4, fixed_abs, tag = 'smem constant byte address 0x4 - core index']
  #allocation1 [shape = 'u32[144,128]{1,0:T(1,128)}', space=vmem, size = 0x12000, scoped, tag = 'internal scratch']
  #allocation2 [shape = 'f32[2,32]{1,0:T(2,128)}', space=vmem, size = 0x400, scoped, tag = 'scratch operand']
  %s0 = inlined_call_operand.hbm [shape: f32[8,256], index: 0, kind: input, shape index: {}]
  %s1 = inlined_call_operand.vmem [shape: f32[32,4], index: 1, kind: input, shape index: {}]
  %s2 = inlined_call_operand.vmem [shape: f32[32,1], index: 2, kind: input, shape index: {}]
  %s3 = inlined_call_operand.vmem [shape: f32[32,256], index: 3, kind: input, shape index: {}]
  %s4 = inlined_call_operand.vmem [shape: f32[1,256], index: 4, kind: input, shape index: {}]
  %s5 = inlined_call_operand.hbm [shape: f32[2,256], index: 5, kind: output, shape index: {}]
  %s6 = sld [smem:[#allocation0]]
  $region65: #{tpu_custom_call.1} parent=0
    _
  %s8 = ssub.s32 1, %s6
  %s9 = scalar_select 0, %s8, %s6
  $region1: #{tpu_custom_call.1} parent=0
    #allocation3 [shape = 'u8[8192]{0}', space=vmem, size = 0x2000, scoped, tag = 'input window, operand 0']
    #allocation4 [shape = 's32[2]{0}', space=sflag, size = 0x8, scoped, tag = 'scoped memory for tpu_custom_call.1']
    #allocation5 [shape = 's32[2]{0}', space=sflag, size = 0x8, scoped, tag = 'scoped memory for tpu_custom_call.1']
    #allocation6 [shape = 'u8[2048]{0}', space=vmem, size = 0x800, scoped, tag = 'output window, operand 0, single buffered']
    %10 = vsyncpa [#allocation4], 0
    %s11 = scalar_lea.sflag [#allocation4], 1
    %12 = vsyncpa %s11, 0
    %13 = vsyncpa [#allocation5], 0
    loop: start=0, step=1, limit=4
    $region2: #{tpu_custom_call.1} parent=1 // loop_pre_header
      _
    $region3: #{tpu_custom_call.1} parent=1 // loop_header
      %s15 = sphi 0, %s19
      %p16 = scmp.ge.s32.totalorder %s15, 4
      %s22 = sphi 0, %s34
      %s23 = sphi 0, %s30
      %s24 = sphi 0, %s22
      %s25 = sphi 0, %s23
      %s26 = sphi 0, %s24
      %s27 = sphi 0, %s25
      %s39 = sphi 0, %s41
      %s42 = sphi 0, %s39
      %s43 = sphi 0, %s42
      %s59 = sphi 0, %s43
      %s63 = sphi 0, %s63
      %s65 = sphi 0, %s63
      %s66 = sphi 0, %s65
      %s80 = sphi 0, %s66
      %s84 = sphi 0, %s84
      %s86 = sphi 0, %s84
      %s87 = sphi 0, %s86
      %s101 = sphi 0, %s87
      %s105 = sphi 0, %s105
      %s107 = sphi 0, %s105
      %s108 = sphi 0, %s107
      %s122 = sphi 0, %s108
      %s126 = sphi 0, %s126
      %s128 = sphi 0, %s126
      %s129 = sphi 0, %s128
      %s143 = sphi 0, %s129
      %s149 = sphi 0, %s151
      %s152 = sphi 0, %s149
      %s153 = sphi 0, %s152
      %s169 = sphi 0, %s153
    $region4: #{tpu_custom_call.1} parent=1 // loop_header_branch
      %18 = sbr.rel (%p16) target = $region8
    $region5: #{tpu_custom_call.1} parent=1 // loop_body
      %s20 = ssub.s32 %s15, 1
      %s21 = ssub.s32 %s15, 2
      %s28 = sadd.s32 1, %s23
      %p29 = scmp.ge.s32.totalorder %s28, 2
      %s30 = scalar_select %p29, 0, %s28
      %s31 = sadd.s32 1, %s22
      %s32 = scalar_select %p29, %s31, %s22
      %p33 = scmp.ge.s32.totalorder %s32, 1
      %s34 = scalar_select %p33, 0, %s32
      %s35 = ssub.s32 %s22, %s34
      %s36 = ssub.s32 %s23, %s30
      %s37 = sor.u32 %s35, %s36
      %p38 = scmp.eq.s32.totalorder %s37, 0
      %s40 = sadd.s32 %s39, 1
      %s41 = scalar_select %p38, %s39, %s40
      %p44 = pneg %p38
      %p45 = scmp.eq.s32.totalorder %s15, 1
      %p46 = por %p44, %p45
      %p47 = scmp.ne.s32.totalorder %s39, %s42
      %p48 = scmp.eq.s32.totalorder %s15, 0
      %p49 = por %p47, %p48
      %p50 = scmp.ne.s32.totalorder %s39, %s42
      %p51 = scmp.eq.s32.totalorder %s20, 1
      %p52 = por %p50, %p51
      %p53 = scmp.ne.s32.totalorder %s42, %s43
      %p54 = scmp.eq.s32.totalorder %s20, 0
      %p55 = por %p53, %p54
      %p56 = scmp.ne.s32.totalorder %s42, %s43
      %p57 = scmp.eq.s32.totalorder %s21, 1
      %p58 = por %p56, %p57
      %p60 = scmp.ne.s32.totalorder %s43, %s59
      %p61 = scmp.eq.s32.totalorder %s21, 0
      %p62 = por %p60, %p61
      %s64 = sadd.s32 %s63, 1
      %p67 = scmp.eq.s32.totalorder %s15, 1
      %p68 = scmp.ne.s32.totalorder %s63, %s65
      %p69 = scmp.eq.s32.totalorder %s15, 0
      %p70 = por %p68, %p69
      %p71 = scmp.ne.s32.totalorder %s63, %s65
      %p72 = scmp.eq.s32.totalorder %s20, 1
      %p73 = por %p71, %p72
      %p74 = scmp.ne.s32.totalorder %s65, %s66
      %p75 = scmp.eq.s32.totalorder %s20, 0
      %p76 = por %p74, %p75
      %p77 = scmp.ne.s32.totalorder %s65, %s66
      %p78 = scmp.eq.s32.totalorder %s21, 1
      %p79 = por %p77, %p78
      %p81 = scmp.ne.s32.totalorder %s66, %s80
      %p82 = scmp.eq.s32.totalorder %s21, 0
      %p83 = por %p81, %p82
      %s85 = sadd.s32 %s84, 1
      %p88 = scmp.eq.s32.totalorder %s15, 1
      %p89 = scmp.ne.s32.totalorder %s84, %s86
      %p90 = scmp.eq.s32.totalorder %s15, 0
      %p91 = por %p89, %p90
      %p92 = scmp.ne.s32.totalorder %s84, %s86
      %p93 = scmp.eq.s32.totalorder %s20, 1
      %p94 = por %p92, %p93
      %p95 = scmp.ne.s32.totalorder %s86, %s87
      %p96 = scmp.eq.s32.totalorder %s20, 0
      %p97 = por %p95, %p96
      %p98 = scmp.ne.s32.totalorder %s86, %s87
      %p99 = scmp.eq.s32.totalorder %s21, 1
      %p100 = por %p98, %p99
      %p102 = scmp.ne.s32.totalorder %s87, %s101
      %p103 = scmp.eq.s32.totalorder %s21, 0
      %p104 = por %p102, %p103
      %s106 = sadd.s32 %s105, 1
      %p109 = scmp.eq.s32.totalorder %s15, 1
      %p110 = scmp.ne.s32.totalorder %s105, %s107
      %p111 = scmp.eq.s32.totalorder %s15, 0
      %p112 = por %p110, %p111
      %p113 = scmp.ne.s32.totalorder %s105, %s107
      %p114 = scmp.eq.s32.totalorder %s20, 1
      %p115 = por %p113, %p114
      %p116 = scmp.ne.s32.totalorder %s107, %s108
      %p117 = scmp.eq.s32.totalorder %s20, 0
      %p118 = por %p116, %p117
      %p119 = scmp.ne.s32.totalorder %s107, %s108
      %p120 = scmp.eq.s32.totalorder %s21, 1
      %p121 = por %p119, %p120
      %p123 = scmp.ne.s32.totalorder %s108, %s122
      %p124 = scmp.eq.s32.totalorder %s21, 0
      %p125 = por %p123, %p124
      %s127 = sadd.s32 %s126, 1
      %p130 = scmp.eq.s32.totalorder %s15, 1
      %p131 = scmp.ne.s32.totalorder %s126, %s128
      %p132 = scmp.eq.s32.totalorder %s15, 0
      %p133 = por %p131, %p132
      %p134 = scmp.ne.s32.totalorder %s126, %s128
      %p135 = scmp.eq.s32.totalorder %s20, 1
      %p136 = por %p134, %p135
      %p137 = scmp.ne.s32.totalorder %s128, %s129
      %p138 = scmp.eq.s32.totalorder %s20, 0
      %p139 = por %p137, %p138
      %p140 = scmp.ne.s32.totalorder %s128, %s129
      %p141 = scmp.eq.s32.totalorder %s21, 1
      %p142 = por %p140, %p141
      %p144 = scmp.ne.s32.totalorder %s129, %s143
      %p145 = scmp.eq.s32.totalorder %s21, 0
      %p146 = por %p144, %p145
      %s147 = ssub.s32 %s22, %s34
      %p148 = scmp.eq.s32.totalorder %s147, 0
      %s150 = sadd.s32 %s149, 1
      %s151 = scalar_select %p148, %s149, %s150
      %p154 = pneg %p148
      %p155 = scmp.eq.s32.totalorder %s15, 1
      %p156 = por %p154, %p155
      %p157 = scmp.ne.s32.totalorder %s149, %s152
      %p158 = scmp.eq.s32.totalorder %s15, 0
      %p159 = por %p157, %p158
      %p160 = scmp.ne.s32.totalorder %s149, %s152
      %p161 = scmp.eq.s32.totalorder %s20, 1
      %p162 = por %p160, %p161
      %p163 = scmp.ne.s32.totalorder %s152, %s153
      %p164 = scmp.eq.s32.totalorder %s20, 0
      %p165 = por %p163, %p164
      %p166 = scmp.ne.s32.totalorder %s152, %s153
      %p167 = scmp.eq.s32.totalorder %s21, 1
      %p168 = por %p166, %p167
      %p170 = scmp.ne.s32.totalorder %s153, %s169
      %p171 = scmp.eq.s32.totalorder %s21, 0
      %p172 = por %p170, %p171
      %p173 = scmp.le.s32.totalorder 1, %s15
      %p174 = scmp.lt.s32.totalorder %s15, 3
      %p175 = pnand %p173, %p174
      %p176 = pneg %p175
      // Predicated region
      $region9: #{tpu_custom_call.1} parent=5 // pred_check
        _
      $region10: #{tpu_custom_call.1} parent=5 // pred_check_branch
        %178 = sbr.rel (%p175) target = $region12
      $region11: #{tpu_custom_call.1} parent=5 // pred_region
        %s179 = ssub.s32 %s15, 1
        // Predicated region
        $region13: #{tpu_custom_call.1} parent=11 // pred_check
          %p180 = pneg %p76
        $region14: #{tpu_custom_call.1} parent=11 // pred_check_branch
          %182 = sbr.rel (%p180) target = $region16
        $region15: #{tpu_custom_call.1} parent=11 // pred_region
          _
        $region16: #{tpu_custom_call.1} parent=11 // pred_fallthru
          _
        // Predicated region
        $region17: #{tpu_custom_call.1} parent=11 // pred_check
          %p183 = pneg %p97
        $region18: #{tpu_custom_call.1} parent=11 // pred_check_branch
          %185 = sbr.rel (%p183) target = $region20
        $region19: #{tpu_custom_call.1} parent=11 // pred_region
          _
        $region20: #{tpu_custom_call.1} parent=11 // pred_fallthru
          _
        // Predicated region
        $region21: #{tpu_custom_call.1} parent=11 // pred_check
          %p186 = pneg %p118
        $region22: #{tpu_custom_call.1} parent=11 // pred_check_branch
          %188 = sbr.rel (%p186) target = $region24
        $region23: #{tpu_custom_call.1} parent=11 // pred_region
          _
        $region24: #{tpu_custom_call.1} parent=11 // pred_fallthru
          _
        // Predicated region
        $region25: #{tpu_custom_call.1} parent=11 // pred_check
          %p189 = pneg %p139
        $region26: #{tpu_custom_call.1} parent=11 // pred_check_branch
          %191 = sbr.rel (%p189) target = $region28
        $region27: #{tpu_custom_call.1} parent=11 // pred_region
          _
        $region28: #{tpu_custom_call.1} parent=11 // pred_fallthru
          _
      $region12: #{tpu_custom_call.1} parent=5 // pred_fallthru
        _
      %p192 = scmp.lt.s32.totalorder %s15, 2
      // Predicated region
      $region29: #{tpu_custom_call.1} parent=5 // pred_check
        %p193 = pneg %p192
      $region30: #{tpu_custom_call.1} parent=5 // pred_check_branch
        %195 = sbr.rel (%p193) target = $region32
      $region31: #{tpu_custom_call.1} parent=5 // pred_region
        // Predicated region
        $region33: #{tpu_custom_call.1} parent=31 // pred_check
          %p196 = pneg %p49
        $region34: #{tpu_custom_call.1} parent=31 // pred_check_branch
          %198 = sbr.rel (%p196) target = $region36
        $region35: #{tpu_custom_call.1} parent=31 // pred_region
          %s199 = sand.u32 %s39, 1
          %s200 = scalar_lea.sflag [#allocation4], %s199
          %s201 = sand.u32 %s39, 1
          %s202 = smul.addr %s201, 8
          %s203 = scalar_lea.vmem [#allocation3], %s202
          %s205 = ssub.s32 128, 128
          %206 = vsyncadd %s200, %s205
          %s207 = smul.addr %s22, 2
          %s208 = sadd.s32 %s23, %s207
          %s209 = smul.addr %s208, 128
          %s210 = scalar_lea.hbm %s0, %s209
          %s212 = sshll.u32 %s203, 4
          %s213 = int_to_ptr.vmem [resolvable:$true] %s212
          %215 = dma.hbm_to_vmem [thread:$0]  %s210, 128, %s213, %s200
        $region36: #{tpu_custom_call.1} parent=31 // pred_fallthru
          _
      $region32: #{tpu_custom_call.1} parent=5 // pred_fallthru
        _
      %p216 = scmp.le.s32.totalorder 1, %s15
      %p217 = scmp.lt.s32.totalorder %s15, 3
      %p218 = pnand %p216, %p217
      %p219 = pneg %p218
      // Predicated region
      $region37: #{tpu_custom_call.1} parent=5 // pred_check
        _
      $region38: #{tpu_custom_call.1} parent=5 // pred_check_branch
        %221 = sbr.rel (%p218) target = $region40
      $region39: #{tpu_custom_call.1} parent=5 // pred_region
        %s222 = ssub.s32 %s15, 1
        %s223 = sand.u32 %s42, 1
        %s224 = scalar_lea.sflag [#allocation4], %s223
        %s225 = sand.u32 %s42, 1
        %s226 = smul.addr %s225, 8
        %s227 = scalar_lea.vmem [#allocation3], %s226
        // Predicated region
        $region41: #{tpu_custom_call.1} parent=39 // pred_check
          %p228 = pneg %p55
        $region42: #{tpu_custom_call.1} parent=39 // pred_check_branch
          %230 = sbr.rel (%p228) target = $region44
        $region43: #{tpu_custom_call.1} parent=39 // pred_region
          %231 = dma.done %s224, 128
        $region44: #{tpu_custom_call.1} parent=39 // pred_fallthru
          _
        %s232 = sand.u32 %s42, 1
        %s233 = scalar_lea.sflag [#allocation4], %s232
        %s234 = sand.u32 %s42, 1
        %s235 = smul.addr %s234, 8
        %s236 = scalar_lea.vmem [#allocation3], %s235
        %p237 = pneg %p55
        %p238 = pneg %p52
        %p239 = pneg %p76
        %p240 = pneg %p73
        %p241 = pneg %p97
        %p242 = pneg %p94
        %p243 = pneg %p118
        %p244 = pneg %p115
        %p245 = pneg %p139
        %p246 = pneg %p136
        %p247 = pneg %p165
        %p248 = pneg %p162
        %p249 = scmp.eq.s32.totalorder %s25, 0
        // Predicated region
        $region45: #{tpu_custom_call.1} parent=39 // pred_check
          %p250 = pneg %p249
        $region46: #{tpu_custom_call.1} parent=39 // pred_check_branch
          %252 = sbr.rel (%p250) target = $region48
        $region47: #{tpu_custom_call.1} parent=39 // pred_region
          %vm253 = vcmask 254976
          %254 = vst.msk [vmem:[#allocation2] sm:$0x3] %vm253, 0.0
        $region48: #{tpu_custom_call.1} parent=39 // pred_fallthru
          _
        %v255 = vld [vmem:[%s1] sm:$0xff]
        %v256 = vld [vmem:[%s1 + $0x8] sm:$0xff]
        %v257 = vld [vmem:[%s1 + $0x10] sm:$0xff]
        %v258 = vld [vmem:[%s1 + $0x18] sm:$0xff]
        %v259 = vld [vmem:[%s2] sm:$0xff]
        %v260 = vld [vmem:[%s2 + $0x8] sm:$0xff]
        %v261 = vld [vmem:[%s2 + $0x10] sm:$0xff]
        %v262 = vld [vmem:[%s2 + $0x18] sm:$0xff]
        %v263 = vld [vmem:[%s227] sm:$0xf]
        %265 = vset.pattern.permute.xlu0 0
        %266 = vperm.xlu0 %265, %v259
        %v267 = vpop.permute.xlu0 %266
        %270 = vset.pattern.permute.xlu0 0
        %271 = vperm.xlu0 %270, %v260
        %v272 = vpop.permute.xlu0 %271
        %275 = vset.pattern.permute.xlu0 0
        %276 = vperm.xlu0 %275, %v261
        %v277 = vpop.permute.xlu0 %276
        %280 = vset.pattern.permute.xlu0 0
        %281 = vperm.xlu0 %280, %v262
        %v282 = vpop.permute.xlu0 %281
        %vm284 = vcmask 31744
        %v286 = vsel %vm284, %v255, 0
        %v289 = vsel %vm284, %v256, 0
        %v292 = vsel %vm284, %v257, 0
        %v295 = vsel %vm284, %v258, 0
        %vm297 = vcmask 1043456
        %v299 = vsel %vm297, %v263, 0
        %301 = vmatprep.subr.mxu0 0.0
        %302 = vmatpush1.msra.mxu0 0.0
        %303 = vmatprep.subr.mxu0 0.0
        %304 = vmatpush1.msra.mxu0 0.0
        %305 = vmatprep.subr.mxu0 0.0
        %306 = vmatpush1.msra.mxu0 0.0
        %307 = vmatprep.subr.mxu0 0.0
        %308 = vmatpush1.msra.mxu0 0.0
        %309 = vmatprep.subr.mxu0 0.0
        %310 = vmatpush1.msra.mxu0 0.0
        %311 = vmatprep.subr.mxu0 0.0
        %312 = vmatpush1.msra.mxu0 0.0
        %313 = vmatprep.subr.mxu0 0.0
        %314 = vmatpush1.msra.mxu0 0.0
        %315 = vmatprep.subr.mxu0 0.0
        %316 = vmatpush1.msra.mxu0 0.0
        %317 = vmatprep.subr.mxu0 0.0
        %318 = vmatpush1.msra.mxu0 0.0
        %319 = vmatprep.subr.mxu0 0.0
        %320 = vmatpush1.msra.mxu0 0.0
        %321 = vmatprep.subr.mxu0 0.0
        %322 = vmatpush1.msra.mxu0 0.0
        %323 = vmatprep.subr.mxu0 0.0
        %324 = vmatpush1.msra.mxu0 0.0
        %325 = vmatprep.subr.mxu0 0.0
        %326 = vmatpush1.msra.mxu0 0.0
        %327 = vmatprep.subr.mxu0 0.0
        %328 = vmatpush1.msra.mxu0 0.0
        %329 = vmatprep.subr.mxu0 0.0
        %330 = vmatpush1.msra.mxu0 0.0
        %331 = vmatprep.subr.mxu0 0.0
        %332 = vmatpush1.msra.mxu0 %v299
        %333 = vmatprep.subr.mxu0 0.0
        %334 = vmatpush2.msra.mxu0 0.0
        %335 = vmatprep.subr.mxu0 0.0
        %336 = vmatpush2.msra.mxu0 0.0
        %337 = vmatprep.subr.mxu0 0.0
        %338 = vmatpush2.msra.mxu0 0.0
        %339 = vmatprep.subr.mxu0 0.0
        %340 = vmatpush2.msra.mxu0 0.0
        %341 = vmatprep.subr.mxu0 0.0
        %342 = vmatpush2.msra.mxu0 0.0
        %343 = vmatprep.subr.mxu0 0.0
        %344 = vmatpush2.msra.mxu0 0.0
        %345 = vmatprep.subr.mxu0 0.0
        %346 = vmatpush2.msra.mxu0 0.0
        %347 = vmatprep.subr.mxu0 0.0
        %348 = vmatpush2.msra.mxu0 0.0
        %349 = vmatprep.subr.mxu0 0.0
        %350 = vmatpush2.msra.mxu0 0.0
        %351 = vmatprep.subr.mxu0 0.0
        %352 = vmatpush2.msra.mxu0 0.0
        %353 = vmatprep.subr.mxu0 0.0
        %354 = vmatpush2.msra.mxu0 0.0
        %355 = vmatprep.subr.mxu0 0.0
        %356 = vmatpush2.msra.mxu0 0.0
        %357 = vmatprep.subr.mxu0 0.0
        %358 = vmatpush2.msra.mxu0 0.0
        %359 = vmatprep.subr.mxu0 0.0
        %360 = vmatpush2.msra.mxu0 0.0
        %361 = vmatprep.subr.mxu0 0.0
        %362 = vmatpush2.msra.mxu0 0.0
        %363 = vmatprep.subr.mxu0 0.0
        %364 = vmatpush2.msra.mxu0 0.0
        %365 = vmatprep.mubr.f32.mxu0 0.0
        %366 = vmatmul.mubr.f32.gmra.mxu0 %v286
        %v367 = vpop.f32.mrf.mxu0
        %v368 = vadd.f32 %v267, %v367
        %v369 = vpop.f32.mrf.mxu0
        %370 = vmatprep.mubr.f32.mxu0 0.0
        %371 = vmatmul.mubr.f32.gmra.mxu0 %v289
        %v372 = vpop.f32.mrf.mxu0
        %v373 = vadd.f32 %v272, %v372
        %v374 = vpop.f32.mrf.mxu0
        %375 = vmatprep.mubr.f32.mxu0 0.0
        %376 = vmatmul.mubr.f32.gmra.mxu0 %v292
        %v377 = vpop.f32.mrf.mxu0
        %v378 = vadd.f32 %v277, %v377
        %v379 = vpop.f32.mrf.mxu0
        %380 = vmatprep.mubr.f32.mxu0 0.0
        %381 = vmatmul.mubr.f32.gmra.mxu0 %v295
        %v382 = vpop.f32.mrf.mxu0
        %v383 = vadd.f32 %v282, %v382
        %v384 = vpop.f32.mrf.mxu0
        %385 = vdwg.mxu0
        %v386 = vmax.f32 %v368, 0.0
        %v387 = vmax.f32 %v373, 0.0
        %v388 = vmax.f32 %v378, 0.0
        %v389 = vmax.f32 %v383, 0.0
        %390 = vmatprep.subr.mxu0 0.0
        %391 = vmatpush1.xpose.msra.mxu0 0.0
        %392 = vmatprep.subr.mxu0 0.0
        %393 = vmatpush1.xpose.msra.mxu0 0.0
        %394 = vmatprep.subr.mxu0 0.0
        %395 = vmatpush1.xpose.msra.mxu0 0.0
        %396 = vmatprep.subr.mxu0 0.0
        %397 = vmatpush1.xpose.msra.mxu0 0.0
        %398 = vmatprep.subr.mxu0 0.0
        %399 = vmatpush1.xpose.msra.mxu0 0.0
        %400 = vmatprep.subr.mxu0 0.0
        %401 = vmatpush1.xpose.msra.mxu0 0.0
        %402 = vmatprep.subr.mxu0 0.0
        %403 = vmatpush1.xpose.msra.mxu0 0.0
        %404 = vmatprep.subr.mxu0 0.0
        %405 = vmatpush1.xpose.msra.mxu0 0.0
        %406 = vmatprep.subr.mxu0 0.0
        %407 = vmatpush1.xpose.msra.mxu0 0.0
        %408 = vmatprep.subr.mxu0 0.0
        %409 = vmatpush1.xpose.msra.mxu0 0.0
        %410 = vmatprep.subr.mxu0 0.0
        %411 = vmatpush1.xpose.msra.mxu0 0.0
        %412 = vmatprep.subr.mxu0 0.0
        %413 = vmatpush1.xpose.msra.mxu0 0.0
        %414 = vmatprep.subr.mxu0 0.0
        %415 = vmatpush1.xpose.msra.mxu0 %v389
        %416 = vmatprep.subr.mxu0 0.0
        %417 = vmatpush1.xpose.msra.mxu0 %v388
        %418 = vmatprep.subr.mxu0 0.0
        %419 = vmatpush1.xpose.msra.mxu0 %v387
        %420 = vmatprep.subr.mxu0 0.0
        %421 = vmatpush1.xpose.msra.mxu0 %v386
        %422 = vmatprep.subr.mxu0 0.0
        %423 = vmatpush2.xpose.msra.mxu0 0.0
        %424 = vmatprep.subr.mxu0 0.0
        %425 = vmatpush2.xpose.msra.mxu0 0.0
        %426 = vmatprep.subr.mxu0 0.0
        %427 = vmatpush2.xpose.msra.mxu0 0.0
        %428 = vmatprep.subr.mxu0 0.0
        %429 = vmatpush2.xpose.msra.mxu0 0.0
        %430 = vmatprep.subr.mxu0 0.0
        %431 = vmatpush2.xpose.msra.mxu0 0.0
        %432 = vmatprep.subr.mxu0 0.0
        %433 = vmatpush2.xpose.msra.mxu0 0.0
        %434 = vmatprep.subr.mxu0 0.0
        %435 = vmatpush2.xpose.msra.mxu0 0.0
        %436 = vmatprep.subr.mxu0 0.0
        %437 = vmatpush2.xpose.msra.mxu0 0.0
        %438 = vmatprep.subr.mxu0 0.0
        %439 = vmatpush2.xpose.msra.mxu0 0.0
        %440 = vmatprep.subr.mxu0 0.0
        %441 = vmatpush2.xpose.msra.mxu0 0.0
        %442 = vmatprep.subr.mxu0 0.0
        %443 = vmatpush2.xpose.msra.mxu0 0.0
        %444 = vmatprep.subr.mxu0 0.0
        %445 = vmatpush2.xpose.msra.mxu0 0.0
        %446 = vmatprep.subr.mxu0 0.0
        %447 = vmatpush2.xpose.msra.mxu0 0.0
        %448 = vmatprep.subr.mxu0 0.0
        %449 = vmatpush2.xpose.msra.mxu0 0.0
        %450 = vmatprep.subr.mxu0 0.0
        %451 = vmatpush2.xpose.msra.mxu0 0.0
        %452 = vmatprep.subr.mxu0 0.0
        %453 = vmatpush2.xpose.msra.mxu0 0.0
        %454 = vmatprep.mubr.f32.mxu0 0.0
        %455 = vmatmul.mubr.f32.gmra.mxu0 1.0
        %v456 = vpop.f32.mrf.mxu0
        %v457 = vadd.f32 0.0, %v456
        %v458 = vpop.f32.mrf.mxu0
        %459 = vdwg.mxu0
        %v460 = vld [vmem:[#allocation2] sm:$0x1]
        %v461 = vadd.f32 %v460, %v457
        %vm462 = vcmask 253952
        %463 = vst.msk [vmem:[#allocation2] sm:$0x1] %vm462, %v461
        %v464 = vld [vmem:[%s227 + $0x4] sm:$0xf]
        %v466 = vsel %vm297, %v464, 0
        %468 = vmatprep.subr.mxu0 0.0
        %469 = vmatpush1.msra.mxu0 0.0
        %470 = vmatprep.subr.mxu0 0.0
        %471 = vmatpush1.msra.mxu0 0.0
        %472 = vmatprep.subr.mxu0 0.0
        %473 = vmatpush1.msra.mxu0 0.0
        %474 = vmatprep.subr.mxu0 0.0
        %475 = vmatpush1.msra.mxu0 0.0
        %476 = vmatprep.subr.mxu0 0.0
        %477 = vmatpush1.msra.mxu0 0.0
        %478 = vmatprep.subr.mxu0 0.0
        %479 = vmatpush1.msra.mxu0 0.0
        %480 = vmatprep.subr.mxu0 0.0
        %481 = vmatpush1.msra.mxu0 0.0
        %482 = vmatprep.subr.mxu0 0.0
        %483 = vmatpush1.msra.mxu0 0.0
        %484 = vmatprep.subr.mxu0 0.0
        %485 = vmatpush1.msra.mxu0 0.0
        %486 = vmatprep.subr.mxu0 0.0
        %487 = vmatpush1.msra.mxu0 0.0
        %488 = vmatprep.subr.mxu0 0.0
        %489 = vmatpush1.msra.mxu0 0.0
        %490 = vmatprep.subr.mxu0 0.0
        %491 = vmatpush1.msra.mxu0 0.0
        %492 = vmatprep.subr.mxu0 0.0
        %493 = vmatpush1.msra.mxu0 0.0
        %494 = vmatprep.subr.mxu0 0.0
        %495 = vmatpush1.msra.mxu0 0.0
        %496 = vmatprep.subr.mxu0 0.0
        %497 = vmatpush1.msra.mxu0 0.0
        %498 = vmatprep.subr.mxu0 0.0
        %499 = vmatpush1.msra.mxu0 %v466
        %500 = vmatprep.subr.mxu0 0.0
        %501 = vmatpush2.msra.mxu0 0.0
        %502 = vmatprep.subr.mxu0 0.0
        %503 = vmatpush2.msra.mxu0 0.0
        %504 = vmatprep.subr.mxu0 0.0
        %505 = vmatpush2.msra.mxu0 0.0
        %506 = vmatprep.subr.mxu0 0.0
        %507 = vmatpush2.msra.mxu0 0.0
        %508 = vmatprep.subr.mxu0 0.0
        %509 = vmatpush2.msra.mxu0 0.0
        %510 = vmatprep.subr.mxu0 0.0
        %511 = vmatpush2.msra.mxu0 0.0
        %512 = vmatprep.subr.mxu0 0.0
        %513 = vmatpush2.msra.mxu0 0.0
        %514 = vmatprep.subr.mxu0 0.0
        %515 = vmatpush2.msra.mxu0 0.0
        %516 = vmatprep.subr.mxu0 0.0
        %517 = vmatpush2.msra.mxu0 0.0
        %518 = vmatprep.subr.mxu0 0.0
        %519 = vmatpush2.msra.mxu0 0.0
        %520 = vmatprep.subr.mxu0 0.0
        %521 = vmatpush2.msra.mxu0 0.0
        %522 = vmatprep.subr.mxu0 0.0
        %523 = vmatpush2.msra.mxu0 0.0
        %524 = vmatprep.subr.mxu0 0.0
        %525 = vmatpush2.msra.mxu0 0.0
        %526 = vmatprep.subr.mxu0 0.0
        %527 = vmatpush2.msra.mxu0 0.0
        %528 = vmatprep.subr.mxu0 0.0
        %529 = vmatpush2.msra.mxu0 0.0
        %530 = vmatprep.subr.mxu0 0.0
        %531 = vmatpush2.msra.mxu0 0.0
        %532 = vmatprep.mubr.f32.mxu0 0.0
        %533 = vmatmul.mubr.f32.gmra.mxu0 %v286
        %v534 = vpop.f32.mrf.mxu0
        %v535 = vadd.f32 %v267, %v534
        %v536 = vpop.f32.mrf.mxu0
        %537 = vmatprep.mubr.f32.mxu0 0.0
        %538 = vmatmul.mubr.f32.gmra.mxu0 %v289
        %v539 = vpop.f32.mrf.mxu0
        %v540 = vadd.f32 %v272, %v539
        %v541 = vpop.f32.mrf.mxu0
        %542 = vmatprep.mubr.f32.mxu0 0.0
        %543 = vmatmul.mubr.f32.gmra.mxu0 %v292
        %v544 = vpop.f32.mrf.mxu0
        %v545 = vadd.f32 %v277, %v544
        %v546 = vpop.f32.mrf.mxu0
        %547 = vmatprep.mubr.f32.mxu0 0.0
        %548 = vmatmul.mubr.f32.gmra.mxu0 %v295
        %v549 = vpop.f32.mrf.mxu0
        %v550 = vadd.f32 %v282, %v549
        %v551 = vpop.f32.mrf.mxu0
        %552 = vdwg.mxu0
        %v553 = vmax.f32 %v535, 0.0
        %v554 = vmax.f32 %v540, 0.0
        %v555 = vmax.f32 %v545, 0.0
        %v556 = vmax.f32 %v550, 0.0
        %557 = vmatprep.subr.mxu0 0.0
        %558 = vmatpush1.xpose.msra.mxu0 0.0
        %559 = vmatprep.subr.mxu0 0.0
        %560 = vmatpush1.xpose.msra.mxu0 0.0
        %561 = vmatprep.subr.mxu0 0.0
        %562 = vmatpush1.xpose.msra.mxu0 0.0
        %563 = vmatprep.subr.mxu0 0.0
        %564 = vmatpush1.xpose.msra.mxu0 0.0
        %565 = vmatprep.subr.mxu0 0.0
        %566 = vmatpush1.xpose.msra.mxu0 0.0
        %567 = vmatprep.subr.mxu0 0.0
        %568 = vmatpush1.xpose.msra.mxu0 0.0
        %569 = vmatprep.subr.mxu0 0.0
        %570 = vmatpush1.xpose.msra.mxu0 0.0
        %571 = vmatprep.subr.mxu0 0.0
        %572 = vmatpush1.xpose.msra.mxu0 0.0
        %573 = vmatprep.subr.mxu0 0.0
        %574 = vmatpush1.xpose.msra.mxu0 0.0
        %575 = vmatprep.subr.mxu0 0.0
        %576 = vmatpush1.xpose.msra.mxu0 0.0
        %577 = vmatprep.subr.mxu0 0.0
        %578 = vmatpush1.xpose.msra.mxu0 0.0
        %579 = vmatprep.subr.mxu0 0.0
        %580 = vmatpush1.xpose.msra.mxu0 0.0
        %581 = vmatprep.subr.mxu0 0.0
        %582 = vmatpush1.xpose.msra.mxu0 %v556
        %583 = vmatprep.subr.mxu0 0.0
        %584 = vmatpush1.xpose.msra.mxu0 %v555
        %585 = vmatprep.subr.mxu0 0.0
        %586 = vmatpush1.xpose.msra.mxu0 %v554
        %587 = vmatprep.subr.mxu0 0.0
        %588 = vmatpush1.xpose.msra.mxu0 %v553
        %589 = vmatprep.subr.mxu0 0.0
        %590 = vmatpush2.xpose.msra.mxu0 0.0
        %591 = vmatprep.subr.mxu0 0.0
        %592 = vmatpush2.xpose.msra.mxu0 0.0
        %593 = vmatprep.subr.mxu0 0.0
        %594 = vmatpush2.xpose.msra.mxu0 0.0
        %595 = vmatprep.subr.mxu0 0.0
        %596 = vmatpush2.xpose.msra.mxu0 0.0
        %597 = vmatprep.subr.mxu0 0.0
        %598 = vmatpush2.xpose.msra.mxu0 0.0
        %599 = vmatprep.subr.mxu0 0.0
        %600 = vmatpush2.xpose.msra.mxu0 0.0
        %601 = vmatprep.subr.mxu0 0.0
        %602 = vmatpush2.xpose.msra.mxu0 0.0
        %603 = vmatprep.subr.mxu0 0.0
        %604 = vmatpush2.xpose.msra.mxu0 0.0
        %605 = vmatprep.subr.mxu0 0.0
        %606 = vmatpush2.xpose.msra.mxu0 0.0
        %607 = vmatprep.subr.mxu0 0.0
        %608 = vmatpush2.xpose.msra.mxu0 0.0
        %609 = vmatprep.subr.mxu0 0.0
        %610 = vmatpush2.xpose.msra.mxu0 0.0
        %611 = vmatprep.subr.mxu0 0.0
        %612 = vmatpush2.xpose.msra.mxu0 0.0
        %613 = vmatprep.subr.mxu0 0.0
        %614 = vmatpush2.xpose.msra.mxu0 0.0
        %615 = vmatprep.subr.mxu0 0.0
        %616 = vmatpush2.xpose.msra.mxu0 0.0
        %617 = vmatprep.subr.mxu0 0.0
        %618 = vmatpush2.xpose.msra.mxu0 0.0
        %619 = vmatprep.subr.mxu0 0.0
        %620 = vmatpush2.xpose.msra.mxu0 0.0
        %621 = vmatprep.mubr.f32.mxu0 0.0
        %622 = vmatmul.mubr.f32.gmra.mxu0 1.0
        %v623 = vpop.f32.mrf.mxu0
        %v624 = vadd.f32 0.0, %v623
        %v625 = vpop.f32.mrf.mxu0
        %626 = vdwg.mxu0
        %v627 = vld [vmem:[#allocation2 + $0x1] sm:$0x1]
        %v628 = vadd.f32 %v627, %v624
        %629 = vst.msk [vmem:[#allocation2 + $0x1] sm:$0x1] %vm462, %v628
        %p630 = scmp.eq.s32.totalorder %s25, 1
        // Predicated region
        $region49: #{tpu_custom_call.1} parent=39 // pred_check
          %p631 = pneg %p630
        $region50: #{tpu_custom_call.1} parent=39 // pred_check_branch
          %633 = sbr.rel (%p631) target = $region52
        $region51: #{tpu_custom_call.1} parent=39 // pred_region
          %v634 = vld [vmem:[#allocation2] sm:$0x3]
          %v635 = vmul.f32 %v634, 0.00390625
          %v636 = vld [vmem:[%s3] sm:$0xff]
          %v637 = vld [vmem:[%s3 + $0x8] sm:$0xff]
          %v638 = vld [vmem:[%s3 + $0x10] sm:$0xff]
          %v639 = vld [vmem:[%s3 + $0x18] sm:$0xff]
          %v640 = vld [vmem:[%s3 + $0x20] sm:$0xff]
          %v641 = vld [vmem:[%s3 + $0x28] sm:$0xff]
          %v642 = vld [vmem:[%s3 + $0x30] sm:$0xff]
          %v643 = vld [vmem:[%s3 + $0x38] sm:$0xff]
          %v644 = vld [vmem:[%s4] sm:$0x3]
          %v646 = vlaneseq
          %v647 = vshrl.u32 %v646, 7
          %v648 = vsub.s32 0, %v647
          %v649 = vrot.slane %v644, %v648
          %v650 = vlaneseq
          %v651 = vshrl.u32 %v650, 7
          %v652 = vsub.s32 1, %v651
          %v653 = vrot.slane %v644, %v652
          %vm656 = vcmask 261120
          %v658 = vsel %vm656, %v635, 0
          %660 = vmatprep.subr.mxu0 0.0
          %661 = vmatpush1.msra.mxu0 0.0
          %662 = vmatprep.subr.mxu0 0.0
          %663 = vmatpush1.msra.mxu0 0.0
          %664 = vmatprep.subr.mxu0 0.0
          %665 = vmatpush1.msra.mxu0 0.0
          %666 = vmatprep.subr.mxu0 0.0
          %667 = vmatpush1.msra.mxu0 0.0
          %668 = vmatprep.subr.mxu0 0.0
          %669 = vmatpush1.msra.mxu0 0.0
          %670 = vmatprep.subr.mxu0 0.0
          %671 = vmatpush1.msra.mxu0 0.0
          %672 = vmatprep.subr.mxu0 0.0
          %673 = vmatpush1.msra.mxu0 0.0
          %674 = vmatprep.subr.mxu0 0.0
          %675 = vmatpush1.msra.mxu0 0.0
          %676 = vmatprep.subr.mxu0 0.0
          %677 = vmatpush1.msra.mxu0 0.0
          %678 = vmatprep.subr.mxu0 0.0
          %679 = vmatpush1.msra.mxu0 0.0
          %680 = vmatprep.subr.mxu0 0.0
          %681 = vmatpush1.msra.mxu0 0.0
          %682 = vmatprep.subr.mxu0 0.0
          %683 = vmatpush1.msra.mxu0 0.0
          %684 = vmatprep.subr.mxu0 %v643
          %685 = vmatpush1.msra.mxu0 %v642
          %686 = vmatprep.subr.mxu0 %v641
          %687 = vmatpush1.msra.mxu0 %v640
          %688 = vmatprep.subr.mxu0 %v639
          %689 = vmatpush1.msra.mxu0 %v638
          %690 = vmatprep.subr.mxu0 %v637
          %691 = vmatpush1.msra.mxu0 %v636
          %692 = vmatprep.subr.mxu0 0.0
          %693 = vmatpush2.msra.mxu0 0.0
          %694 = vmatprep.subr.mxu0 0.0
          %695 = vmatpush2.msra.mxu0 0.0
          %696 = vmatprep.subr.mxu0 0.0
          %697 = vmatpush2.msra.mxu0 0.0
          %698 = vmatprep.subr.mxu0 0.0
          %699 = vmatpush2.msra.mxu0 0.0
          %700 = vmatprep.subr.mxu0 0.0
          %701 = vmatpush2.msra.mxu0 0.0
          %702 = vmatprep.subr.mxu0 0.0
          %703 = vmatpush2.msra.mxu0 0.0
          %704 = vmatprep.subr.mxu0 0.0
          %705 = vmatpush2.msra.mxu0 0.0
          %706 = vmatprep.subr.mxu0 0.0
          %707 = vmatpush2.msra.mxu0 0.0
          %708 = vmatprep.subr.mxu0 0.0
          %709 = vmatpush2.msra.mxu0 0.0
          %710 = vmatprep.subr.mxu0 0.0
          %711 = vmatpush2.msra.mxu0 0.0
          %712 = vmatprep.subr.mxu0 0.0
          %713 = vmatpush2.msra.mxu0 0.0
          %714 = vmatprep.subr.mxu0 0.0
          %715 = vmatpush2.msra.mxu0 0.0
          %716 = vmatprep.subr.mxu0 0.0
          %717 = vmatpush2.msra.mxu0 0.0
          %718 = vmatprep.subr.mxu0 0.0
          %719 = vmatpush2.msra.mxu0 0.0
          %720 = vmatprep.subr.mxu0 0.0
          %721 = vmatpush2.msra.mxu0 0.0
          %722 = vmatprep.subr.mxu0 0.0
          %723 = vmatpush2.msra.mxu0 0.0
          %724 = vmatprep.mubr.f32.mxu0 0.0
          %725 = vmatmul.mubr.f32.gmra.mxu0 %v658
          %v726 = vpop.f32.mrf.mxu0
          %v727 = vadd.f32 %v649, %v726
          %v728 = vpop.f32.mrf.mxu0
          %v729 = vadd.f32 %v653, %v728
          %730 = vdwg.mxu0
          %v731 = vmul.f32 %v727, %v727
          %vm732 = vcmask 1041408
          %v733 = vsel %vm732, %v731, 0.0
          %734 = vadd.xlane.f32.xlu0 %v733
          %v735 = vpop.xlane.xlu0 %734
          %v736 = vmax.f32 %v735, 1e-24
          %v737 = vrsqrt.pop %v736
          %v738 = vmul.f32 %v727, %v737
          %739 = vst [vmem:[#allocation6] sm:$0x3] %v738
          %740 = vst [vmem:[#allocation6 + $0x2] sm:$0x3] %v729
        $region52: #{tpu_custom_call.1} parent=39 // pred_fallthru
          _
        // Predicated region
        $region53: #{tpu_custom_call.1} parent=39 // pred_check
          %p741 = pneg %p162
        $region54: #{tpu_custom_call.1} parent=39 // pred_check_branch
          %743 = sbr.rel (%p741) target = $region56
        $region55: #{tpu_custom_call.1} parent=39 // pred_region
          %s745 = ssub.s32 64, 64
          %746 = vsyncadd [#allocation5], %s745
          %s747 = smul.addr %s24, 2
          %s748 = smul.addr %s747, 32
          %s749 = scalar_lea.hbm %s5, %s748
          %s751 = sshll.u32 [#allocation6], 4
          %s752 = int_to_ptr.vmem [resolvable:$true] %s751
          %754 = dma.vmem_to_hbm [thread:$0]  %s752, 64, %s749, [#allocation5]
        $region56: #{tpu_custom_call.1} parent=39 // pred_fallthru
          _
        // Predicated region
        $region57: #{tpu_custom_call.1} parent=39 // pred_check
          %p755 = pneg %p162
        $region58: #{tpu_custom_call.1} parent=39 // pred_check_branch
          %757 = sbr.rel (%p755) target = $region60
        $region59: #{tpu_custom_call.1} parent=39 // pred_region
          %758 = dma.done [#allocation5], 64
        $region60: #{tpu_custom_call.1} parent=39 // pred_fallthru
          _
      $region40: #{tpu_custom_call.1} parent=5 // pred_fallthru
        _
      %p759 = scmp.le.s32.totalorder 2, %s15
      // Predicated region
      $region61: #{tpu_custom_call.1} parent=5 // pred_check
        %p760 = pneg %p759
      $region62: #{tpu_custom_call.1} parent=5 // pred_check_branch
        %762 = sbr.rel (%p760) target = $region64
      $region63: #{tpu_custom_call.1} parent=5 // pred_region
        %s763 = ssub.s32 %s15, 2
      $region64: #{tpu_custom_call.1} parent=5 // pred_fallthru
        _
    $region6: #{tpu_custom_call.1} parent=1 // loop_footer
      %s19 = sadd.s32 1, %s15
    $region7: #{tpu_custom_call.1} parent=1 // loop_footer_branch
      %14 = sbr.rel target = $region3
    $region8: #{tpu_custom_call.1} parent=1 // loop_exit
      _
    %764 = vsyncpa [#allocation4], 1
    %s765 = scalar_lea.sflag [#allocation4], 1
    %766 = vsyncpa %s765, 1
    %767 = vsyncpa [#allocation5], 1
    %s768 = scalar_lea.sflag [#allocation5], 1
    %769 = vsyncpa %s768, 1

</llo_original>
